<compile_context>
chip_gen: v6e
topology: v6e:2x2x1
jax: 0.10.0
libtpu: 0.0.40
codegen_flags: <defaults>
</compile_context>

<pallas_src>
import functools

import jax
import jax.numpy as jnp
from jax import lax
from jax.experimental import pallas as pl
from jax.experimental.pallas import tpu as pltpu

_EPS = 1e-5


def _round_up(n, m):
    return (n + m - 1) // m * m


def _pick_tile(n, max_tile, align):
    """Largest tile <= max_tile that is a multiple of `align` and divides
    round_up(n, align); returns (tile, padded_n)."""
    n_al = _round_up(max(n, 1), align)
    t = min(n_al, max_tile)
    while t > align and n_al % t != 0:
        t -= align
    return t, _round_up(n, t)


def _moments_kernel(x_ref, s1_ref, s2_ref):
    # x_ref:  (TR, THW) input tile (VMEM).
    # s1_ref: (TR, 1) f32 running sum(x)    -- resident across the HW grid axis.
    # s2_ref: (TR, 1) f32 running sum(x*x)  -- resident across the HW grid axis.
    j = pl.program_id(1)

    @pl.when(j == 0)
    def _init():
        s1_ref[...] = jnp.zeros_like(s1_ref)
        s2_ref[...] = jnp.zeros_like(s2_ref)

    x = x_ref[...].astype(jnp.float32)
    s1_ref[...] += jnp.sum(x, axis=-1, keepdims=True)
    s2_ref[...] += jnp.sum(x * x, axis=-1, keepdims=True)


def _apply_kernel(x_ref, a_ref, b_ref, o_ref):
    # Single FMA pass: out = A[b,c] * x + B[b,c]; one unmasked lane-dense store.
    x = x_ref[...].astype(jnp.float32)
    o_ref[...] = (a_ref[...] * x + b_ref[...]).astype(o_ref.dtype)


@functools.partial(jax.jit, static_argnames=("num_groups",))
def gn_forward(x, pbn_weight, pbn_bias, gn_weight, gn_bias, num_groups):
    """x: NCHW float array. Returns NCHW output matching the PyTorch GN module."""
    B, C, H, W = x.shape
    G = num_groups
    assert C % G == 0
    cpg = C // G
    HW = H * W
    BC = B * C

    TR, BC_pad = _pick_tile(BC, 256, 8)        # sublane (row) tile
    THW, HW_pad = _pick_tile(HW, 1024, 128)    # lane tile

    x2d = x.reshape(BC, HW)
    x_pad = jnp.pad(x2d, ((0, BC_pad - BC), (0, HW_pad - HW)))

    n_r = BC_pad // TR
    n_h = HW_pad // THW

    # ---------- pass 1: per-(b,c) one-pass moments (sum, sum of squares) ----------
    s1, s2 = pl.pallas_call(
        _moments_kernel,
        out_shape=(
            jax.ShapeDtypeStruct((BC_pad, 1), jnp.float32),
            jax.ShapeDtypeStruct((BC_pad, 1), jnp.float32),
        ),
        grid_spec=pltpu.PrefetchScalarGridSpec(
            num_scalar_prefetch=0,
            grid=(n_r, n_h),
            in_specs=[pl.BlockSpec((TR, THW), lambda i, j: (i, j))],
            out_specs=[
                pl.BlockSpec((TR, 1), lambda i, j: (i, 0)),
                pl.BlockSpec((TR, 1), lambda i, j: (i, 0)),
            ],
        ),
        compiler_params=pltpu.CompilerParams(
            dimension_semantics=("parallel", "arbitrary")),
    )(x_pad)

    # ---------- tiny O(B*C) glue: fold both norms + both affines into A, B ----------
    f32 = jnp.float32
    ex = (s1[:BC, 0] / HW).reshape(B, C).astype(f32)    # E_hw[x]   per (b,c)
    ex2 = (s2[:BC, 0] / HW).reshape(B, C).astype(f32)   # E_hw[x^2] per (b,c)

    gamma = pbn_weight.reshape(C).astype(f32)
    beta = pbn_bias.reshape(C).astype(f32)
    w_g = gn_weight.reshape(G).astype(f32)
    b_g = gn_bias.reshape(G).astype(f32)

    # Stage 1: BatchNorm2d (batch stats, biased variance):  y = a_c * x + d_c
    mean_c = jnp.mean(ex, axis=0)
    var_c = jnp.mean(ex2, axis=0) - mean_c * mean_c
    a_c = gamma * lax.rsqrt(var_c + _EPS)
    d_c = beta - a_c * mean_c

    # Analytic per-(b,c) moments of y (no extra pass over the data).
    ey = a_c[None, :] * ex + d_c[None, :]
    ey2 = (a_c * a_c)[None, :] * ex2 + 2.0 * (a_c * d_c)[None, :] * ex + (d_c * d_c)[None, :]

    # Stage 2: per-(b,group) batch_norm (biased var) + per-group affine, folded in.
    mean_g = ey.reshape(B, G, cpg).mean(axis=-1)                        # (B, G)
    var_g = ey2.reshape(B, G, cpg).mean(axis=-1) - mean_g * mean_g      # (B, G)
    s_bg = w_g[None, :] * lax.rsqrt(var_g + _EPS)                       # (B, G)

    a_cg = a_c.reshape(G, cpg)
    d_cg = d_c.reshape(G, cpg)
    A = (s_bg[:, :, None] * a_cg[None, :, :]).reshape(BC)
    Boff = (s_bg[:, :, None] * (d_cg[None, :, :] - mean_g[:, :, None])
            + b_g[None, :, None]).reshape(BC)

    A_pad = jnp.pad(A, (0, BC_pad - BC)).reshape(BC_pad, 1)
    B_pad = jnp.pad(Boff, (0, BC_pad - BC)).reshape(BC_pad, 1)

    # ---------- pass 2: single fused-multiply-add apply over lane-dense tiles ----------
    out_pad = pl.pallas_call(
        _apply_kernel,
        out_shape=jax.ShapeDtypeStruct((BC_pad, HW_pad), x.dtype),
        grid_spec=pltpu.PrefetchScalarGridSpec(
            num_scalar_prefetch=0,
            grid=(n_r, n_h),
            in_specs=[
                pl.BlockSpec((TR, THW), lambda i, j: (i, j)),
                pl.BlockSpec((TR, 1), lambda i, j: (i, 0)),
                pl.BlockSpec((TR, 1), lambda i, j: (i, 0)),
            ],
            out_specs=pl.BlockSpec((TR, THW), lambda i, j: (i, j)),
        ),
        compiler_params=pltpu.CompilerParams(
            dimension_semantics=("parallel", "parallel")),
    )(x_pad, A_pad, B_pad)

    return out_pad[:BC, :HW].reshape(B, C, H, W)


def gn_reference(x, pbn_weight, pbn_bias, gn_weight, gn_bias, num_groups):
    """Pure-JAX reference mirroring the PyTorch module (training-mode BN), two-pass."""
    B, C, H, W = x.shape
    mean_c = jnp.mean(x, axis=(0, 2, 3), keepdims=True)
    var_c = jnp.mean((x - mean_c) ** 2, axis=(0, 2, 3), keepdims=True)
    y = (x - mean_c) / jnp.sqrt(var_c + _EPS)
    y = y * pbn_weight.reshape(1, C, 1, 1) + pbn_bias.reshape(1, C, 1, 1)

    yg = y.reshape(B, num_groups, -1)
    mg = jnp.mean(yg, axis=-1, keepdims=True)
    vg = jnp.mean((yg - mg) ** 2, axis=-1, keepdims=True)
    out = (yg - mg) / jnp.sqrt(vg + _EPS)
    out = gn_weight.reshape(1, num_groups, 1) * out + gn_bias.reshape(1, num_groups, 1)
    return out.reshape(B, C, H, W)


if __name__ == "__main__":
    B, C, H, W = 2, 4, 16, 16
    G = 2

    key = jax.random.PRNGKey(0)
    kx, k1, k2, k3, k4 = jax.random.split(key, 5)

    x = jax.random.normal(kx, (B, C, H, W), dtype=jnp.float32)

    # Deterministic parameter init (module __init__ gives ones/zeros; we perturb
    # deterministically so every affine path is exercised non-trivially).
    pbn_weight = 1.0 + 0.1 * jax.random.normal(k1, (C,), dtype=jnp.float32)      # pbn.weight
    pbn_bias = 0.1 * jax.random.normal(k2, (C,), dtype=jnp.float32)              # pbn.bias
    gn_weight = 1.0 + 0.1 * jax.random.normal(k3, (1, G, 1), dtype=jnp.float32)  # self.weight
    gn_bias = 0.1 * jax.random.normal(k4, (1, G, 1), dtype=jnp.float32)          # self.bias

    out = gn_forward(x, pbn_weight, pbn_bias, gn_weight, gn_bias, G)
    out = jax.block_until_ready(out)

    ref = gn_reference(x, pbn_weight, pbn_bias, gn_weight, gn_bias, G)
    assert out.shape == x.shape and out.dtype == x.dtype
    assert jnp.allclose(out, ref, rtol=1e-3, atol=1e-3), "mismatch vs pure-JAX reference"

    print("KERNEL_OK")
</pallas_src>

<mosaic_0001>
module attributes {stable_mosaic.version = 11 : i64} {
  func.func @_moments_kernel(%arg0: i32, %arg1: i32, %arg2: memref<8x256xf32, #tpu.memory_space<vmem>>, %arg3: memref<8x1xf32, #tpu.memory_space<vmem>>, %arg4: memref<8x1xf32, #tpu.memory_space<vmem>>) attributes {dimension_semantics = [#tpu.dimension_semantics<parallel>, #tpu.dimension_semantics<arbitrary>], iteration_bounds = array<i64: 1, 1>, scalar_prefetch = 0 : i64, scratch_operands = 0 : i64, tpu.core_type = #tpu.core_type<tc>, window_params = [{transform_indices = @transform_0, window_bounds = array<i64: 8, 256>}, {transform_indices = @transform_1, window_bounds = array<i64: 8, 1>}, {transform_indices = @transform_2, window_bounds = array<i64: 8, 1>}]} {
    %c0_i32 = arith.constant 0 : i32
    %0 = arith.cmpi eq, %arg1, %c0_i32 : i32
    %1 = arith.extui %0 : i1 to i32
    %c0_i32_0 = arith.constant 0 : i32
    %2 = arith.cmpi ne, %1, %c0_i32_0 : i32
    scf.if %2 {
      %cst_11 = arith.constant 0.000000e+00 : f32
      %15 = vector.broadcast %cst_11 : f32 to vector<8x1xf32>
      %c0_12 = arith.constant 0 : index
      %c0_13 = arith.constant 0 : index
      %16 = vector.load %arg3[%c0_12, %c0_13] : memref<8x1xf32, #tpu.memory_space<vmem>>, vector<8x1xf32>
      tpu.vector_store %arg3[%c0_12, %c0_13], %15 {strides = array<i32>} : memref<8x1xf32, #tpu.memory_space<vmem>>, vector<8x1xf32>,
      %cst_14 = arith.constant 0.000000e+00 : f32
      %17 = vector.broadcast %cst_14 : f32 to vector<8x1xf32>
      %c0_15 = arith.constant 0 : index
      %c0_16 = arith.constant 0 : index
      %18 = vector.load %arg4[%c0_15, %c0_16] : memref<8x1xf32, #tpu.memory_space<vmem>>, vector<8x1xf32>
      tpu.vector_store %arg4[%c0_15, %c0_16], %17 {strides = array<i32>} : memref<8x1xf32, #tpu.memory_space<vmem>>, vector<8x1xf32>,
    } else {
    }
    %c0 = arith.constant 0 : index
    %c0_1 = arith.constant 0 : index
    %3 = vector.load %arg2[%c0, %c0_1] : memref<8x256xf32, #tpu.memory_space<vmem>>, vector<8x256xf32>
    %c0_2 = arith.constant 0 : index
    %c0_3 = arith.constant 0 : index
    %4 = vector.load %arg3[%c0_2, %c0_3] : memref<8x1xf32, #tpu.memory_space<vmem>>, vector<8x1xf32>
    %cst = arith.constant dense<0.000000e+00> : vector<8xf32>
    %5 = vector.multi_reduction <add>, %3, %cst [1] : vector<8x256xf32> to vector<8xf32>
    %6 = vector.shape_cast %5 : vector<8xf32> to vector<8x1xf32>
    %7 = arith.addf %4, %6 : vector<8x1xf32>
    %c0_4 = arith.constant 0 : index
    %c0_5 = arith.constant 0 : index
    %8 = vector.load %arg3[%c0_4, %c0_5] : memref<8x1xf32, #tpu.memory_space<vmem>>, vector<8x1xf32>
    tpu.vector_store %arg3[%c0_4, %c0_5], %7 {strides = array<i32>} : memref<8x1xf32, #tpu.memory_space<vmem>>, vector<8x1xf32>,
    %c0_6 = arith.constant 0 : index
    %c0_7 = arith.constant 0 : index
    %9 = vector.load %arg4[%c0_6, %c0_7] : memref<8x1xf32, #tpu.memory_space<vmem>>, vector<8x1xf32>
    %10 = arith.mulf %3, %3 : vector<8x256xf32>
    %cst_8 = arith.constant dense<0.000000e+00> : vector<8xf32>
    %11 = vector.multi_reduction <add>, %10, %cst_8 [1] : vector<8x256xf32> to vector<8xf32>
    %12 = vector.shape_cast %11 : vector<8xf32> to vector<8x1xf32>
    %13 = arith.addf %9, %12 : vector<8x1xf32>
    %c0_9 = arith.constant 0 : index
    %c0_10 = arith.constant 0 : index
    %14 = vector.load %arg4[%c0_9, %c0_10] : memref<8x1xf32, #tpu.memory_space<vmem>>, vector<8x1xf32>
    tpu.vector_store %arg4[%c0_9, %c0_10], %13 {strides = array<i32>} : memref<8x1xf32, #tpu.memory_space<vmem>>, vector<8x1xf32>,
    return
  }
  func.func @transform_0(%arg0: i32, %arg1: i32) -> (i32, i32) {
    %c0_i32 = arith.constant 0 : i32
    return %arg0, %arg1 : i32, i32
  }
  func.func @transform_1(%arg0: i32, %arg1: i32) -> (i32, i32) {
    %c0_i32 = arith.constant 0 : i32
    %c0_i32_0 = arith.constant 0 : i32
    return %arg0, %c0_i32 : i32, i32
  }
  func.func @transform_2(%arg0: i32, %arg1: i32) -> (i32, i32) {
    %c0_i32 = arith.constant 0 : i32
    %c0_i32_0 = arith.constant 0 : i32
    return %arg0, %c0_i32 : i32, i32
  }
}

module attributes {stable_mosaic.version = 11 : i64} {
  func.func @_apply_kernel(%arg0: i32, %arg1: i32, %arg2: memref<8x256xf32, #tpu.memory_space<vmem>>, %arg3: memref<8x1xf32, #tpu.memory_space<vmem>>, %arg4: memref<8x1xf32, #tpu.memory_space<vmem>>, %arg5: memref<8x256xf32, #tpu.memory_space<vmem>>) attributes {dimension_semantics = [#tpu.dimension_semantics<parallel>, #tpu.dimension_semantics<parallel>], iteration_bounds = array<i64: 1, 1>, scalar_prefetch = 0 : i64, scratch_operands = 0 : i64, tpu.core_type = #tpu.core_type<tc>, window_params = [{transform_indices = @transform_0, window_bounds = array<i64: 8, 256>}, {transform_indices = @transform_1, window_bounds = array<i64: 8, 1>}, {transform_indices = @transform_2, window_bounds = array<i64: 8, 1>}, {transform_indices = @transform_3, window_bounds = array<i64: 8, 256>}]} {
    %c0 = arith.constant 0 : index
    %c0_0 = arith.constant 0 : index
    %0 = vector.load %arg2[%c0, %c0_0] : memref<8x256xf32, #tpu.memory_space<vmem>>, vector<8x256xf32>
    %c0_1 = arith.constant 0 : index
    %c0_2 = arith.constant 0 : index
    %1 = vector.load %arg3[%c0_1, %c0_2] : memref<8x1xf32, #tpu.memory_space<vmem>>, vector<8x1xf32>
    %2 = vector.broadcast %1 : vector<8x1xf32> to vector<8x256xf32>
    %3 = arith.mulf %2, %0 : vector<8x256xf32>
    %c0_3 = arith.constant 0 : index
    %c0_4 = arith.constant 0 : index
    %4 = vector.load %arg4[%c0_3, %c0_4] : memref<8x1xf32, #tpu.memory_space<vmem>>, vector<8x1xf32>
    %5 = vector.broadcast %4 : vector<8x1xf32> to vector<8x256xf32>
    %6 = arith.addf %3, %5 : vector<8x256xf32>
    %c0_5 = arith.constant 0 : index
    %c0_6 = arith.constant 0 : index
    %7 = vector.load %arg5[%c0_5, %c0_6] : memref<8x256xf32, #tpu.memory_space<vmem>>, vector<8x256xf32>
    tpu.vector_store %arg5[%c0_5, %c0_6], %6 {strides = array<i32>} : memref<8x256xf32, #tpu.memory_space<vmem>>, vector<8x256xf32>,
    return
  }
  func.func @transform_0(%arg0: i32, %arg1: i32) -> (i32, i32) {
    %c0_i32 = arith.constant 0 : i32
    return %arg0, %arg1 : i32, i32
  }
  func.func @transform_1(%arg0: i32, %arg1: i32) -> (i32, i32) {
    %c0_i32 = arith.constant 0 : i32
    %c0_i32_0 = arith.constant 0 : i32
    return %arg0, %c0_i32 : i32, i32
  }
  func.func @transform_2(%arg0: i32, %arg1: i32) -> (i32, i32) {
    %c0_i32 = arith.constant 0 : i32
    %c0_i32_0 = arith.constant 0 : i32
    return %arg0, %c0_i32 : i32, i32
  }
  func.func @transform_3(%arg0: i32, %arg1: i32) -> (i32, i32) {
    %c0_i32 = arith.constant 0 : i32
    return %arg0, %arg1 : i32, i32
  }
}

</mosaic_0001>

<llo_original>
// kernel: mul.53
$region0: #{mul.53}
  #allocation0 [shape = 's32[1]{0}', space=sflag, size = 0x4, scoped, tag = 'scoped memory for mul.53']
  %s0 = inlined_call_operand.vmem [shape: f32[4], index: 0, kind: input, shape index: {}, may-alias: {0,1}]
  %s1 = inlined_call_operand.vmem [shape: f32[4], index: 1, kind: input, shape index: {}, may-alias: {0,1}]
  %s2 = inlined_call_operand.vmem [shape: f32[4], index: 2, kind: output, shape index: {}]
  %v3 = vld [vmem:[%s0] sm:$0x1]
  %v4 = vld [vmem:[%s1] sm:$0x1]
  %5 = xla_tuple %v3, %v4
  %6 = xla_tuple %5
  %v7 = vmul.f32 %v3, %v4
  %8 = xla_tuple %v7
  %9 = vst [vmem:[%s2] sm:$0x1] %v7

// kernel: gn_forward.2
$region0: #{gn_forward.2}
  #allocation0 [shape = 'u32[]', space=smem, size = 0x4, offset = 0x4, fixed_abs, tag = 'smem constant byte address 0x4 - core index']
  #allocation1 [shape = 'u32[144,128]{1,0:T(1,128)}', space=vmem, size = 0x12000, scoped, tag = 'internal scratch']
  %s0 = inlined_call_operand.vmem [shape: f32[8,256], index: 0, kind: input, shape index: {}]
  %s1 = inlined_call_operand.vmem [shape: f32[8,1], index: 1, kind: output, shape index: {0}]
  %s2 = inlined_call_operand.vmem [shape: f32[8,1], index: 2, kind: output, shape index: {1}]
  %3 = xla_tuple %s1, %s2
  %s4 = sld [smem:[#allocation0]]
  $region26: #{gn_forward.2} parent=0
    _
  %s6 = ssub.s32 1, %s4
  %s7 = scalar_select 0, %s6, %s4
  // Predicated region
  $region2: #{gn_forward.2} parent=0 // pred_check
    _
  $region3: #{gn_forward.2} parent=0 // pred_check_branch
    %9 = sbr.rel (0) target = $region5
  $region4: #{gn_forward.2} parent=0 // pred_region
    _
  $region5: #{gn_forward.2} parent=0 // pred_fallthru
    _
  %p10 = scmp.eq.s32.totalorder 0, 0
  // Predicated region
  $region6: #{gn_forward.2} parent=0 // pred_check
    %p11 = pneg %p10
  $region7: #{gn_forward.2} parent=0 // pred_check_branch
    %13 = sbr.rel (%p11) target = $region9
  $region8: #{gn_forward.2} parent=0 // pred_region
    %vm14 = vcmask 7168
    %15 = vst.msk [vmem:[%s1] sm:$0xff] %vm14, 0.0
    %16 = vst.msk [vmem:[%s2] sm:$0xff] %vm14, 0.0
  $region9: #{gn_forward.2} parent=0 // pred_fallthru
    _
  %v17 = vld [vmem:[%s0] sm:$0xff]
  %v18 = vld [vmem:[%s0 + $0x8] sm:$0xff]
  %v19 = vld [vmem:[%s1] sm:$0xff]
  %v20 = vadd.f32 %v17, %v18
  %21 = vadd.xlane.f32.xlu0 %v20
  %v22 = vpop.xlane.xlu0 %21
  %v23 = vadd.f32 %v19, %v22
  %vm24 = vcmask 7168
  %25 = vst.msk [vmem:[%s1] sm:$0xff] %vm24, %v23
  %v26 = vld [vmem:[%s2] sm:$0xff]
  %v27 = vmul.f32 %v17, %v17
  %v28 = vmul.f32 %v18, %v18
  %v29 = vadd.f32 %v27, %v28
  %30 = vadd.xlane.f32.xlu0 %v29
  %v31 = vpop.xlane.xlu0 %30
  %v32 = vadd.f32 %v26, %v31
  %33 = vst.msk [vmem:[%s2] sm:$0xff] %vm24, %v32
  // Predicated region
  $region10: #{gn_forward.2} parent=0 // pred_check
    _
  $region11: #{gn_forward.2} parent=0 // pred_check_branch
    %35 = sbr.rel (0) target = $region13
  $region12: #{gn_forward.2} parent=0 // pred_region
    _
  $region13: #{gn_forward.2} parent=0 // pred_fallthru
    _
  // Predicated region
  $region14: #{gn_forward.2} parent=0 // pred_check
    _
  $region15: #{gn_forward.2} parent=0 // pred_check_branch
    %37 = sbr.rel (0) target = $region17
  $region16: #{gn_forward.2} parent=0 // pred_region
    _
  $region17: #{gn_forward.2} parent=0 // pred_fallthru
    _
  // Predicated region
  $region18: #{gn_forward.2} parent=0 // pred_check
    _
  $region19: #{gn_forward.2} parent=0 // pred_check_branch
    %39 = sbr.rel (0) target = $region21
  $region20: #{gn_forward.2} parent=0 // pred_region
    _
  $region21: #{gn_forward.2} parent=0 // pred_fallthru
    _
  // Predicated region
  $region22: #{gn_forward.2} parent=0 // pred_check
    _
  $region23: #{gn_forward.2} parent=0 // pred_check_branch
    %41 = sbr.rel (0) target = $region25
  $region24: #{gn_forward.2} parent=0 // pred_region
    _
  $region25: #{gn_forward.2} parent=0 // pred_fallthru
    _

// kernel: gn_forward.3
$region0: #{gn_forward.3}
  #allocation0 [shape = 'u32[]', space=smem, size = 0x4, offset = 0x4, fixed_abs, tag = 'smem constant byte address 0x4 - core index']
  #allocation1 [shape = 'u32[144,128]{1,0:T(1,128)}', space=vmem, size = 0x12000, scoped, tag = 'internal scratch']
  %s0 = inlined_call_operand.vmem [shape: f32[8,256], index: 0, kind: input, shape index: {}]
  %s1 = inlined_call_operand.vmem [shape: f32[8,1], index: 1, kind: input, shape index: {}]
  %s2 = inlined_call_operand.vmem [shape: f32[8,1], index: 2, kind: input, shape index: {}]
  %s3 = inlined_call_operand.vmem [shape: f32[8,256], index: 3, kind: output, shape index: {}]
  %s4 = sld [smem:[#allocation0]]
  $region22: #{gn_forward.3} parent=0
    _
  %s6 = ssub.s32 1, %s4
  %s7 = scalar_select 0, %s6, %s4
  // Predicated region
  $region2: #{gn_forward.3} parent=0 // pred_check
    _
  $region3: #{gn_forward.3} parent=0 // pred_check_branch
    %9 = sbr.rel (0) target = $region5
  $region4: #{gn_forward.3} parent=0 // pred_region
    _
  $region5: #{gn_forward.3} parent=0 // pred_fallthru
    _
  // Predicated region
  $region6: #{gn_forward.3} parent=0 // pred_check
    _
  $region7: #{gn_forward.3} parent=0 // pred_check_branch
    %11 = sbr.rel (0) target = $region9
  $region8: #{gn_forward.3} parent=0 // pred_region
    _
  $region9: #{gn_forward.3} parent=0 // pred_fallthru
    _
  // Predicated region
  $region10: #{gn_forward.3} parent=0 // pred_check
    _
  $region11: #{gn_forward.3} parent=0 // pred_check_branch
    %13 = sbr.rel (0) target = $region13
  $region12: #{gn_forward.3} parent=0 // pred_region
    _
  $region13: #{gn_forward.3} parent=0 // pred_fallthru
    _
  %v14 = vld [vmem:[%s0] sm:$0xff]
  %v15 = vld [vmem:[%s0 + $0x8] sm:$0xff]
  %v16 = vld [vmem:[%s1] sm:$0xff]
  %18 = vset.pattern.permute.xlu0 0
  %19 = vperm.xlu0 %18, %v16
  %v20 = vpop.permute.xlu0 %19
  %v22 = vmul.f32 %v20, %v14
  %v23 = vmul.f32 %v20, %v15
  %v24 = vld [vmem:[%s2] sm:$0xff]
  %26 = vset.pattern.permute.xlu0 0
  %27 = vperm.xlu0 %26, %v24
  %v28 = vpop.permute.xlu0 %27
  %v30 = vadd.f32 %v22, %v28
  %v31 = vadd.f32 %v23, %v28
  %32 = vst [vmem:[%s3] sm:$0xff] %v30
  %33 = vst [vmem:[%s3 + $0x8] sm:$0xff] %v31
  // Predicated region
  $region14: #{gn_forward.3} parent=0 // pred_check
    _
  $region15: #{gn_forward.3} parent=0 // pred_check_branch
    %35 = sbr.rel (0) target = $region17
  $region16: #{gn_forward.3} parent=0 // pred_region
    _
  $region17: #{gn_forward.3} parent=0 // pred_fallthru
    _
  // Predicated region
  $region18: #{gn_forward.3} parent=0 // pred_check
    _
  $region19: #{gn_forward.3} parent=0 // pred_check_branch
    %37 = sbr.rel (0) target = $region21
  $region20: #{gn_forward.3} parent=0 // pred_region
    _
  $region21: #{gn_forward.3} parent=0 // pred_fallthru
    _

</llo_original>
